<compile_context>
chip_gen: v5e
topology: v5e:2x2
jax: 0.10.0
libtpu: 0.0.40
codegen_flags: <defaults>
</compile_context>

<pallas_src>
import functools

import jax
import jax.numpy as jnp
from jax.experimental import pallas as pl
from jax.experimental.pallas import tpu as pltpu


def _round_up(v, m):
    return (v + m - 1) // m * m


# ---------------------------------------------------------------------------
# Kernel 1: per-layer precompute (small, single block).
# ---------------------------------------------------------------------------
def _precompute_kernel(x_ref, w_ref, asrc_ref, adst_ref,
                       haug_ref, srow_ref, dcol_ref):
    """H = X @ W; attention logits per node; H augmented with a ones column.

    x_ref    : [N, Fin]
    w_ref    : [Fin, Fout]
    asrc_ref : [1, Fout]     attention vector applied to source (sender)
    adst_ref : [1, Fout]     attention vector applied to destination (receiver)
    haug_ref : [N, Fout+1]   output: [H | 1]
    srow_ref : [1, N]        output: s_j = h_j . a_src   (row over sources)
    dcol_ref : [N, 1]        output: d_i = h_i . a_dst   (column over dests)
    """
    x = x_ref[...].astype(jnp.float32)
    w = w_ref[...].astype(jnp.float32)
    h = jnp.dot(x, w, preferred_element_type=jnp.float32)          # [N, Fout]
    f_out = h.shape[1]

    haug_ref[:, :f_out] = h
    haug_ref[:, f_out:] = jnp.ones((h.shape[0], 1), jnp.float32)

    # Attention logits on the MXU (contract the feature dim), no XLU reductions.
    asrc = asrc_ref[...].astype(jnp.float32)
    adst = adst_ref[...].astype(jnp.float32)
    srow_ref[...] = jnp.einsum("od,nd->on", asrc, h,
                               preferred_element_type=jnp.float32)  # [1, N]
    dcol_ref[...] = jnp.einsum("nd,od->no", h, adst,
                               preferred_element_type=jnp.float32)  # [N, 1]


# ---------------------------------------------------------------------------
# Kernel 2: attention softmax + aggregation, tiled over destination rows.
# ---------------------------------------------------------------------------
def _attention_kernel(adj_ref, haug_ref, srow_ref, dcol_ref, b_ref, out_ref,
                      *, negative_slope, activation):
    """One destination-row tile of one GATConv layer.

    adj_ref  : [TD, N]       bf16 mask, adj[dst, src] (self-loops included)
    haug_ref : [N, Fout+1]   [H | 1], VMEM-resident across the grid
    srow_ref : [1, N]        source logits, VMEM-resident
    dcol_ref : [TD, 1]       destination logits for this tile
    b_ref    : [1, Fout]     bias
    out_ref  : [TD, Fout]
    """
    f_out = out_ref.shape[1]

    d = dcol_ref[...]                                   # [TD, 1]
    s = srow_ref[...]                                   # [1, N]
    e = d + s                                           # [TD, N]
    e = jnp.where(e > 0, e, negative_slope * e)         # LeakyReLU

    adj = adj_ref[...]                                  # [TD, N] bf16
    e = jnp.where(adj > 0, e, jnp.float32(-1e30))

    # Masked softmax over source neighbours.  Every row has a self-loop, so
    # the row max is finite and exp() underflow zeroes the masked entries
    # (no extra "* adj" VPU multiply, no materialized alpha tensor).
    e_max = jnp.max(e, axis=-1, keepdims=True)
    p = jnp.exp(e - e_max)                              # [TD, N]

    # Fused aggregation + softmax denominator: last column of H_aug is ones.
    agg = jnp.dot(p, haug_ref[...], preferred_element_type=jnp.float32)
    num = agg[:, :f_out]                                # [TD, Fout]
    denom = agg[:, f_out:f_out + 1]                     # [TD, 1]
    out = num * pl.reciprocal(denom, approx=True) + b_ref[...]

    if activation == "relu":
        out = jnp.maximum(out, 0.0)
    elif activation == "log_softmax":
        m = jnp.max(out, axis=-1, keepdims=True)
        z = out - m
        out = z - jnp.log(jnp.sum(jnp.exp(z), axis=-1, keepdims=True))

    out_ref[...] = out.astype(out_ref.dtype)


# ---------------------------------------------------------------------------
# Layer wrapper: precompute pallas_call + tiled attention pallas_call.
# ---------------------------------------------------------------------------
def gat_layer(x_pad, adj_pad, w, a_src, a_dst, b, *, tile_rows,
              activation=None, negative_slope=0.2):
    n_pad = x_pad.shape[0]
    f_out = w.shape[1]
    assert n_pad % tile_rows == 0

    def full_spec(arr):
        nd = arr.ndim
        return pl.BlockSpec(arr.shape, lambda *_: (0,) * nd)

    # --- precompute H_aug, s_row, d_col (tiny; single block) ---
    haug, s_row, d_col = pl.pallas_call(
        _precompute_kernel,
        out_shape=(jax.ShapeDtypeStruct((n_pad, f_out + 1), jnp.float32),
                   jax.ShapeDtypeStruct((1, n_pad), jnp.float32),
                   jax.ShapeDtypeStruct((n_pad, 1), jnp.float32)),
        in_specs=[full_spec(x_pad), full_spec(w),
                  full_spec(a_src), full_spec(a_dst)],
        out_specs=(pl.BlockSpec((n_pad, f_out + 1), lambda *_: (0, 0)),
                   pl.BlockSpec((1, n_pad), lambda *_: (0, 0)),
                   pl.BlockSpec((n_pad, 1), lambda *_: (0, 0))),
        compiler_params=pltpu.CompilerParams(vmem_limit_bytes=48 << 20),
    )(x_pad, w, a_src, a_dst)

    # --- attention / aggregation, gridded over destination-row tiles ---
    kernel = functools.partial(_attention_kernel,
                               negative_slope=negative_slope,
                               activation=activation)
    grid = (n_pad // tile_rows,)
    return pl.pallas_call(
        kernel,
        out_shape=jax.ShapeDtypeStruct((n_pad, f_out), jnp.float32),
        grid=grid,
        in_specs=[
            pl.BlockSpec((tile_rows, n_pad), lambda i: (i, 0)),   # adj (bf16 stream)
            pl.BlockSpec((n_pad, f_out + 1), lambda i: (0, 0)),   # H_aug (resident)
            pl.BlockSpec((1, n_pad), lambda i: (0, 0)),           # s_row (resident)
            pl.BlockSpec((tile_rows, 1), lambda i: (i, 0)),       # d_col (tiled)
            pl.BlockSpec((1, f_out), lambda i: (0, 0)),           # bias  (resident)
        ],
        out_specs=pl.BlockSpec((tile_rows, f_out), lambda i: (i, 0)),
        compiler_params=pltpu.CompilerParams(
            dimension_semantics=("parallel",),
            vmem_limit_bytes=48 << 20),
    )(adj_pad, haug, s_row, d_col, b)


# ---------------------------------------------------------------------------
# Full forward pass (Net.forward in eval mode; dropouts are identity).
# ---------------------------------------------------------------------------
def net_forward(x, adj, params, *, tile_rows=256):
    """x: [N, Fin] node features; adj: [N, N] bf16 edge mask adj[dst, src]
    (without self-loops; they are added here, matching add_self_loops=True).
    tile_rows: destination-row tile (multiple of 32).  256 is sized for v7x's
    64 MiB VMEM; on v6e/v5e (128 MiB) 1024+ amortizes per-step overhead better."""
    n = x.shape[0]
    assert tile_rows % 32 == 0
    td = min(tile_rows, _round_up(n, 32))
    n_pad = _round_up(n, td)

    # Pad the node dimension so it tiles evenly; padded rows get a self-loop so
    # their (discarded) softmax rows stay well-defined, and padded source
    # columns are masked out for every real destination.
    x_pad = jnp.zeros((n_pad, x.shape[1]), jnp.float32).at[:n, :].set(
        x.astype(jnp.float32))
    adj_pad = jnp.zeros((n_pad, n_pad), jnp.bfloat16).at[:n, :n].set(
        adj.astype(jnp.bfloat16))
    diag = jnp.arange(n_pad)
    adj_pad = adj_pad.at[diag, diag].set(1.0)       # add_self_loops=True

    # F.dropout(p=0.6) / GATConv attention dropout(p=0.2): identity in eval mode.
    h = gat_layer(x_pad, adj_pad,
                  params["w1"], params["a_src1"], params["a_dst1"],
                  params["b1"], tile_rows=td, activation="relu")
    out = gat_layer(h, adj_pad,
                    params["w2"], params["a_src2"], params["a_dst2"],
                    params["b2"], tile_rows=td, activation="log_softmax")
    return out[:n]


def make_params(key, f_in, hidden, n_classes):
    ks = jax.random.split(key, 6)

    def glorot(k, shape):
        fan_in, fan_out = shape[0], shape[1]
        lim = jnp.sqrt(6.0 / (fan_in + fan_out))
        return jax.random.uniform(k, shape, jnp.float32, -lim, lim)

    return {
        "w1": glorot(ks[0], (f_in, hidden)),
        "a_src1": glorot(ks[1], (1, hidden)),
        "a_dst1": glorot(ks[2], (1, hidden)),
        "b1": jnp.zeros((1, hidden), jnp.float32),
        "w2": glorot(ks[3], (hidden, n_classes)),
        "a_src2": glorot(ks[4], (1, n_classes)),
        "a_dst2": glorot(ks[5], (1, n_classes)),
        "b2": jnp.zeros((1, n_classes), jnp.float32),
    }


def edges_to_adj(edge_index, n):
    """Dense bf16 adjacency mask adj[dst, src] (no self-loops; added later).
    PyG convention: edge_index[0] = source, edge_index[1] = destination."""
    src, dst = edge_index
    return jnp.zeros((n, n), jnp.bfloat16).at[dst, src].set(1.0)


if __name__ == "__main__":
    # Small synthetic "Cora-like" graph (real Cora: N=2708, F=1433, C=7).
    N, F_IN, HIDDEN, N_CLASSES = 64, 48, 8, 7

    key = jax.random.PRNGKey(0)
    k_x, k_p = jax.random.split(key)

    # Node features (NormalizeFeatures => row-normalized non-negative feats).
    x = jax.random.uniform(k_x, (N, F_IN), jnp.float32)
    x = x / jnp.clip(jnp.sum(x, axis=1, keepdims=True), 1e-12)

    # Deterministic directed ring + skip-2 edges (both directions).
    idx = jnp.arange(N)
    src = jnp.concatenate([idx, (idx + 1) % N, idx, (idx + 2) % N])
    dst = jnp.concatenate([(idx + 1) % N, idx, (idx + 2) % N, idx])
    edge_index = jnp.stack([src, dst], axis=0)
    adj = edges_to_adj(edge_index, N)

    params = make_params(k_p, F_IN, HIDDEN, N_CLASSES)

    # tile_rows=32 so the toy graph exercises a multi-step pipelined grid.
    out = net_forward(x, adj, params, tile_rows=32)
    out = jax.block_until_ready(out)

    assert out.shape == (N, N_CLASSES)
    # log_softmax rows must sum to ~1 in prob space.
    assert jnp.allclose(jnp.sum(jnp.exp(out), axis=1), 1.0, atol=1e-4)
    print("KERNEL_OK")
</pallas_src>

<mosaic_0001>
module attributes {stable_mosaic.version = 11 : i64} {
  func.func @_precompute_kernel(%arg0: memref<64x48xf32, #tpu.memory_space<vmem>>, %arg1: memref<48x8xf32, #tpu.memory_space<vmem>>, %arg2: memref<1x8xf32, #tpu.memory_space<vmem>>, %arg3: memref<1x8xf32, #tpu.memory_space<vmem>>, %arg4: memref<64x9xf32, #tpu.memory_space<vmem>>, %arg5: memref<1x64xf32, #tpu.memory_space<vmem>>, %arg6: memref<64x1xf32, #tpu.memory_space<vmem>>) attributes {dimension_semantics = [], scalar_prefetch = 0 : i64, scratch_operands = 0 : i64, tpu.core_type = #tpu.core_type<tc>} {
    %c0 = arith.constant 0 : index
    %c0_0 = arith.constant 0 : index
    %0 = vector.load %arg0[%c0, %c0_0] : memref<64x48xf32, #tpu.memory_space<vmem>>, vector<64x48xf32>
    %c0_1 = arith.constant 0 : index
    %c0_2 = arith.constant 0 : index
    %1 = vector.load %arg1[%c0_1, %c0_2] : memref<48x8xf32, #tpu.memory_space<vmem>>, vector<48x8xf32>
    %cst = arith.constant dense<0.000000e+00> : vector<64x8xf32>
    %2 = tpu.matmul %0, %1, %cst {dimension_numbers = #tpu.dot_dimension_numbers<[1], [0], [0], [1], [0, 0, 1, 1], [], []>} : vector<64x48xf32>, vector<48x8xf32>, vector<64x8xf32> -> vector<64x8xf32>
    %c0_3 = arith.constant 0 : index
    %c0_4 = arith.constant 0 : index
    %3 = vector.load %arg4[%c0_3, %c0_4] : memref<64x9xf32, #tpu.memory_space<vmem>>, vector<64x8xf32>
    tpu.vector_store %arg4[%c0_3, %c0_4], %2 {strides = array<i32>} : memref<64x9xf32, #tpu.memory_space<vmem>>, vector<64x8xf32>,
    %cst_5 = arith.constant 1.000000e+00 : f32
    %4 = vector.broadcast %cst_5 : f32 to vector<64x1xf32>
    %c0_6 = arith.constant 0 : index
    %c8 = arith.constant 8 : index
    %5 = vector.load %arg4[%c0_6, %c8] : memref<64x9xf32, #tpu.memory_space<vmem>>, vector<64x1xf32>
    tpu.vector_store %arg4[%c0_6, %c8], %4 {strides = array<i32>} : memref<64x9xf32, #tpu.memory_space<vmem>>, vector<64x1xf32>,
    %c0_7 = arith.constant 0 : index
    %c0_8 = arith.constant 0 : index
    %6 = vector.load %arg2[%c0_7, %c0_8] : memref<1x8xf32, #tpu.memory_space<vmem>>, vector<1x8xf32>
    %c0_9 = arith.constant 0 : index
    %c0_10 = arith.constant 0 : index
    %7 = vector.load %arg3[%c0_9, %c0_10] : memref<1x8xf32, #tpu.memory_space<vmem>>, vector<1x8xf32>
    "tpu.trace_start"() <{level = 10 : i32, message = "od,nd->on"}> : () -> ()
    %cst_11 = arith.constant dense<0.000000e+00> : vector<1x64xf32>
    %8 = tpu.matmul %6, %2, %cst_11 {dimension_numbers = #tpu.dot_dimension_numbers<[1], [1], [0], [0], [0, 0, 1, 0], [], []>} : vector<1x8xf32>, vector<64x8xf32>, vector<1x64xf32> -> vector<1x64xf32>
    "tpu.trace_stop"() : () -> ()
    %c0_12 = arith.constant 0 : index
    %c0_13 = arith.constant 0 : index
    %9 = vector.load %arg5[%c0_12, %c0_13] : memref<1x64xf32, #tpu.memory_space<vmem>>, vector<1x64xf32>
    tpu.vector_store %arg5[%c0_12, %c0_13], %8 {strides = array<i32>} : memref<1x64xf32, #tpu.memory_space<vmem>>, vector<1x64xf32>,
    "tpu.trace_start"() <{level = 10 : i32, message = "nd,od->no"}> : () -> ()
    %cst_14 = arith.constant dense<0.000000e+00> : vector<64x1xf32>
    %10 = tpu.matmul %2, %7, %cst_14 {dimension_numbers = #tpu.dot_dimension_numbers<[1], [1], [0], [0], [0, 0, 1, 0], [], []>} : vector<64x8xf32>, vector<1x8xf32>, vector<64x1xf32> -> vector<64x1xf32>
    "tpu.trace_stop"() : () -> ()
    %c0_15 = arith.constant 0 : index
    %c0_16 = arith.constant 0 : index
    %11 = vector.load %arg6[%c0_15, %c0_16] : memref<64x1xf32, #tpu.memory_space<vmem>>, vector<64x1xf32>
    tpu.vector_store %arg6[%c0_15, %c0_16], %10 {strides = array<i32>} : memref<64x1xf32, #tpu.memory_space<vmem>>, vector<64x1xf32>,
    return
  }
}

</mosaic_0001>

<llo_original>
// kernel: tpu_custom_call.1
$region0: #{tpu_custom_call.1}
  #allocation0 [shape = 'u32[]', space=smem, size = 0x4, offset = 0x4, fixed_abs, tag = 'smem constant byte address 0x4 - core index']
  #allocation1 [shape = 'u32[72,128]{1,0:T(1,128)}', space=vmem, size = 0x9000, scoped, tag = 'internal scratch']
  %s0 = inlined_call_operand.vmem [shape: f32[64,48], index: 0, kind: input, shape index: {}]
  %s1 = inlined_call_operand.vmem [shape: f32[48,8], index: 1, kind: input, shape index: {}]
  %s2 = inlined_call_operand.vmem [shape: f32[1,8], index: 2, kind: input, shape index: {}]
  %s3 = inlined_call_operand.vmem [shape: f32[1,8], index: 3, kind: input, shape index: {}]
  %s4 = inlined_call_operand.vmem [shape: f32[64,9], index: 4, kind: output, shape index: {0}]
  %s5 = inlined_call_operand.hbm [shape: f32[1,64], index: 5, kind: output, shape index: {1}]
  %s6 = inlined_call_operand.vmem [shape: f32[64,1], index: 6, kind: output, shape index: {2}]
  %7 = xla_tuple %s4, %s5, %s6
  %s8 = sld [smem:[#allocation0]]
  $region42: #{tpu_custom_call.1} parent=0
    _
  %s10 = ssub.s32 1, %s8
  %s11 = scalar_select 0, %s10, %s8
  $region1: #{tpu_custom_call.1} parent=0
    #allocation2 [shape = 'u8[512]{0}', space=vmem, size = 0x400, scoped, tag = 'output window, operand 1, single buffered']
    #allocation3 [shape = 's32[1]{0}', space=sflag, size = 0x4, scoped, tag = 'scoped memory for tpu_custom_call.1']
    %12 = vsyncpa [#allocation3], 0
    // Predicated region
    $region2: #{tpu_custom_call.1} parent=1 // pred_check
      _
    $region3: #{tpu_custom_call.1} parent=1 // pred_check_branch
      %14 = sbr.rel (0) target = $region5
    $region4: #{tpu_custom_call.1} parent=1 // pred_region
      _
    $region5: #{tpu_custom_call.1} parent=1 // pred_fallthru
      _
    // Predicated region
    $region6: #{tpu_custom_call.1} parent=1 // pred_check
      _
    $region7: #{tpu_custom_call.1} parent=1 // pred_check_branch
      %16 = sbr.rel (0) target = $region9
    $region8: #{tpu_custom_call.1} parent=1 // pred_region
      _
    $region9: #{tpu_custom_call.1} parent=1 // pred_fallthru
      _
    // Predicated region
    $region10: #{tpu_custom_call.1} parent=1 // pred_check
      _
    $region11: #{tpu_custom_call.1} parent=1 // pred_check_branch
      %18 = sbr.rel (0) target = $region13
    $region12: #{tpu_custom_call.1} parent=1 // pred_region
      _
    $region13: #{tpu_custom_call.1} parent=1 // pred_fallthru
      _
    // Predicated region
    $region14: #{tpu_custom_call.1} parent=1 // pred_check
      _
    $region15: #{tpu_custom_call.1} parent=1 // pred_check_branch
      %20 = sbr.rel (0) target = $region17
    $region16: #{tpu_custom_call.1} parent=1 // pred_region
      _
    $region17: #{tpu_custom_call.1} parent=1 // pred_fallthru
      _
    %v21 = vld [vmem:[%s0] sm:$0xff]
    %v22 = vld [vmem:[%s0 + $0x8] sm:$0xff]
    %v23 = vld [vmem:[%s0 + $0x10] sm:$0xff]
    %v24 = vld [vmem:[%s0 + $0x18] sm:$0xff]
    %v25 = vld [vmem:[%s0 + $0x20] sm:$0xff]
    %v26 = vld [vmem:[%s0 + $0x28] sm:$0xff]
    %v27 = vld [vmem:[%s0 + $0x30] sm:$0xff]
    %v28 = vld [vmem:[%s0 + $0x38] sm:$0xff]
    %v29 = vld [vmem:[%s1] sm:$0xff]
    %v30 = vld [vmem:[%s1 + $0x8] sm:$0xff]
    %v31 = vld [vmem:[%s1 + $0x10] sm:$0xff]
    %v32 = vld [vmem:[%s1 + $0x18] sm:$0xff]
    %v33 = vld [vmem:[%s1 + $0x20] sm:$0xff]
    %v34 = vld [vmem:[%s1 + $0x28] sm:$0xff]
    %vm35 = vcmask 392192
    %v37 = vsel %vm35, %v21, 0
    %v40 = vsel %vm35, %v22, 0
    %v43 = vsel %vm35, %v23, 0
    %v46 = vsel %vm35, %v24, 0
    %v49 = vsel %vm35, %v25, 0
    %v52 = vsel %vm35, %v26, 0
    %v55 = vsel %vm35, %v27, 0
    %v58 = vsel %vm35, %v28, 0
    %60 = vmatpush.msra.mxu0 0.0
    %61 = vmatpush.msra.mxu0 0.0
    %62 = vmatpush.msra.mxu0 0.0
    %63 = vmatpush.msra.mxu0 0.0
    %64 = vmatpush.msra.mxu0 0.0
    %65 = vmatpush.msra.mxu0 0.0
    %66 = vmatpush.msra.mxu0 0.0
    %67 = vmatpush.msra.mxu0 0.0
    %68 = vmatpush.msra.mxu0 0.0
    %69 = vmatpush.msra.mxu0 0.0
    %70 = vmatpush.msra.mxu0 %v34
    %71 = vmatpush.msra.mxu0 %v33
    %72 = vmatpush.msra.mxu0 %v32
    %73 = vmatpush.msra.mxu0 %v31
    %74 = vmatpush.msra.mxu0 %v30
    %75 = vmatpush.msra.mxu0 %v29
    %76 = vmatmul.f32.gmra.mxu0 %v37
    %v77 = vpop.f32.mrf.mxu0
    %v78 = vadd.f32 0.0, %v77
    %79 = vmatmul.f32.gmra.mxu0 %v40
    %v80 = vpop.f32.mrf.mxu0
    %v81 = vadd.f32 0.0, %v80
    %82 = vmatmul.f32.gmra.mxu0 %v43
    %v83 = vpop.f32.mrf.mxu0
    %v84 = vadd.f32 0.0, %v83
    %85 = vmatmul.f32.gmra.mxu0 %v46
    %v86 = vpop.f32.mrf.mxu0
    %v87 = vadd.f32 0.0, %v86
    %88 = vmatmul.f32.gmra.mxu0 %v49
    %v89 = vpop.f32.mrf.mxu0
    %v90 = vadd.f32 0.0, %v89
    %91 = vmatmul.f32.gmra.mxu0 %v52
    %v92 = vpop.f32.mrf.mxu0
    %v93 = vadd.f32 0.0, %v92
    %94 = vmatmul.f32.gmra.mxu0 %v55
    %v95 = vpop.f32.mrf.mxu0
    %v96 = vadd.f32 0.0, %v95
    %97 = vmatmul.f32.gmra.mxu0 %v58
    %v98 = vpop.f32.mrf.mxu0
    %v99 = vadd.f32 0.0, %v98
    %100 = vdwg.mxu0
    %vm101 = vcmask 64512
    %102 = vst.msk [vmem:[%s4] sm:$0xff] %vm101, %v78
    %103 = vst.msk [vmem:[%s4 + $0x8] sm:$0xff] %vm101, %v81
    %104 = vst.msk [vmem:[%s4 + $0x10] sm:$0xff] %vm101, %v84
    %105 = vst.msk [vmem:[%s4 + $0x18] sm:$0xff] %vm101, %v87
    %106 = vst.msk [vmem:[%s4 + $0x20] sm:$0xff] %vm101, %v90
    %107 = vst.msk [vmem:[%s4 + $0x28] sm:$0xff] %vm101, %v93
    %108 = vst.msk [vmem:[%s4 + $0x30] sm:$0xff] %vm101, %v96
    %109 = vst.msk [vmem:[%s4 + $0x38] sm:$0xff] %vm101, %v99
    %vm110 = vcmask 72768
    %111 = vst.msk [vmem:[%s4] sm:$0xff] %vm110, 1.0
    %112 = vst.msk [vmem:[%s4 + $0x8] sm:$0xff] %vm110, 1.0
    %113 = vst.msk [vmem:[%s4 + $0x10] sm:$0xff] %vm110, 1.0
    %114 = vst.msk [vmem:[%s4 + $0x18] sm:$0xff] %vm110, 1.0
    %115 = vst.msk [vmem:[%s4 + $0x20] sm:$0xff] %vm110, 1.0
    %116 = vst.msk [vmem:[%s4 + $0x28] sm:$0xff] %vm110, 1.0
    %117 = vst.msk [vmem:[%s4 + $0x30] sm:$0xff] %vm110, 1.0
    %118 = vst.msk [vmem:[%s4 + $0x38] sm:$0xff] %vm110, 1.0
    %v119 = vld [vmem:[%s2] sm:$0x1]
    %v120 = vld [vmem:[%s3] sm:$0x1]
    %v122 = vsel %vm101, %v119, 0
    %v125 = vsel %vm101, %v78, 0
    %v128 = vsel %vm101, %v81, 0
    %v131 = vsel %vm101, %v84, 0
    %v134 = vsel %vm101, %v87, 0
    %v137 = vsel %vm101, %v90, 0
    %v140 = vsel %vm101, %v93, 0
    %v143 = vsel %vm101, %v96, 0
    %v146 = vsel %vm101, %v99, 0
    %148 = vmatpush.xpose.msra.mxu0 0.0
    %149 = vmatpush.xpose.msra.mxu0 0.0
    %150 = vmatpush.xpose.msra.mxu0 0.0
    %151 = vmatpush.xpose.msra.mxu0 0.0
    %152 = vmatpush.xpose.msra.mxu0 0.0
    %153 = vmatpush.xpose.msra.mxu0 0.0
    %154 = vmatpush.xpose.msra.mxu0 0.0
    %155 = vmatpush.xpose.msra.mxu0 0.0
    %156 = vmatpush.xpose.msra.mxu0 %v146
    %157 = vmatpush.xpose.msra.mxu0 %v143
    %158 = vmatpush.xpose.msra.mxu0 %v140
    %159 = vmatpush.xpose.msra.mxu0 %v137
    %160 = vmatpush.xpose.msra.mxu0 %v134
    %161 = vmatpush.xpose.msra.mxu0 %v131
    %162 = vmatpush.xpose.msra.mxu0 %v128
    %163 = vmatpush.xpose.msra.mxu0 %v125
    %164 = vmatmul.f32.gmra.mxu0 %v122
    %v165 = vpop.f32.mrf.mxu0
    %v166 = vadd.f32 0.0, %v165
    %167 = vdwg.mxu0
    %vm168 = vcmask 516096
    %169 = vst.msk [vmem:[#allocation2] sm:$0x1] %vm168, %v166
    %v171 = vperm.slane %v120, 0
    %v173 = vmul.f32 %v78, %v171
    %v174 = vmul.f32 %v81, %v171
    %v175 = vmul.f32 %v84, %v171
    %v176 = vmul.f32 %v87, %v171
    %v177 = vmul.f32 %v90, %v171
    %v178 = vmul.f32 %v93, %v171
    %v179 = vmul.f32 %v96, %v171
    %v180 = vmul.f32 %v99, %v171
    %v181 = vsel %vm101, %v173, 0.0
    %182 = vadd.xlane.f32.xlu0 %v181
    %v183 = vpop.xlane.xlu0 %182
    %v184 = vsel %vm101, %v174, 0.0
    %185 = vadd.xlane.f32.xlu0 %v184
    %v186 = vpop.xlane.xlu0 %185
    %v187 = vsel %vm101, %v175, 0.0
    %188 = vadd.xlane.f32.xlu0 %v187
    %v189 = vpop.xlane.xlu0 %188
    %v190 = vsel %vm101, %v176, 0.0
    %191 = vadd.xlane.f32.xlu0 %v190
    %v192 = vpop.xlane.xlu0 %191
    %v193 = vsel %vm101, %v177, 0.0
    %194 = vadd.xlane.f32.xlu0 %v193
    %v195 = vpop.xlane.xlu0 %194
    %v196 = vsel %vm101, %v178, 0.0
    %197 = vadd.xlane.f32.xlu0 %v196
    %v198 = vpop.xlane.xlu0 %197
    %v199 = vsel %vm101, %v179, 0.0
    %200 = vadd.xlane.f32.xlu0 %v199
    %v201 = vpop.xlane.xlu0 %200
    %v202 = vsel %vm101, %v180, 0.0
    %203 = vadd.xlane.f32.xlu0 %v202
    %v204 = vpop.xlane.xlu0 %203
    %vm205 = vcmask 7168
    %206 = vst.msk [vmem:[%s6] sm:$0xff] %vm205, %v183
    %207 = vst.msk [vmem:[%s6 + $0x8] sm:$0xff] %vm205, %v186
    %208 = vst.msk [vmem:[%s6 + $0x10] sm:$0xff] %vm205, %v189
    %209 = vst.msk [vmem:[%s6 + $0x18] sm:$0xff] %vm205, %v192
    %210 = vst.msk [vmem:[%s6 + $0x20] sm:$0xff] %vm205, %v195
    %211 = vst.msk [vmem:[%s6 + $0x28] sm:$0xff] %vm205, %v198
    %212 = vst.msk [vmem:[%s6 + $0x30] sm:$0xff] %vm205, %v201
    %213 = vst.msk [vmem:[%s6 + $0x38] sm:$0xff] %vm205, %v204
    // Predicated region
    $region18: #{tpu_custom_call.1} parent=1 // pred_check
      _
    $region19: #{tpu_custom_call.1} parent=1 // pred_check_branch
      %215 = sbr.rel (0) target = $region21
    $region20: #{tpu_custom_call.1} parent=1 // pred_region
      _
    $region21: #{tpu_custom_call.1} parent=1 // pred_fallthru
      _
    // Predicated region
    $region22: #{tpu_custom_call.1} parent=1 // pred_check
      _
    $region23: #{tpu_custom_call.1} parent=1 // pred_check_branch
      %217 = sbr.rel (0) target = $region25
    $region24: #{tpu_custom_call.1} parent=1 // pred_region
      %219 = vsyncadd [#allocation3], 0
      %s221 = sshll.u32 [#allocation2], 4
      %s222 = int_to_ptr.vmem [resolvable:$true] %s221
      %s223 = sshll.u32 %s5, 4
      %s224 = int_to_ptr.hbm [resolvable:$true] %s223
      %226 = dma.vmem_to_hbm [thread:$0]  %s222, 16, %s224, [#allocation3]
    $region25: #{tpu_custom_call.1} parent=1 // pred_fallthru
      _
    // Predicated region
    $region26: #{tpu_custom_call.1} parent=1 // pred_check
      _
    $region27: #{tpu_custom_call.1} parent=1 // pred_check_branch
      %228 = sbr.rel (0) target = $region29
    $region28: #{tpu_custom_call.1} parent=1 // pred_region
      _
    $region29: #{tpu_custom_call.1} parent=1 // pred_fallthru
      _
    // Predicated region
    $region30: #{tpu_custom_call.1} parent=1 // pred_check
      _
    $region31: #{tpu_custom_call.1} parent=1 // pred_check_branch
      %230 = sbr.rel (0) target = $region33
    $region32: #{tpu_custom_call.1} parent=1 // pred_region
      _
    $region33: #{tpu_custom_call.1} parent=1 // pred_fallthru
      _
    // Predicated region
    $region34: #{tpu_custom_call.1} parent=1 // pred_check
      _
    $region35: #{tpu_custom_call.1} parent=1 // pred_check_branch
      %232 = sbr.rel (0) target = $region37
    $region36: #{tpu_custom_call.1} parent=1 // pred_region
      %234 = dma.done [#allocation3], 16
    $region37: #{tpu_custom_call.1} parent=1 // pred_fallthru
      _
    // Predicated region
    $region38: #{tpu_custom_call.1} parent=1 // pred_check
      _
    $region39: #{tpu_custom_call.1} parent=1 // pred_check_branch
      %236 = sbr.rel (0) target = $region41
    $region40: #{tpu_custom_call.1} parent=1 // pred_region
      _
    $region41: #{tpu_custom_call.1} parent=1 // pred_fallthru
      _
    %237 = vsyncpa [#allocation3], 1

</llo_original>
